<compile_context>
chip_gen: v7x
topology: tpu7x:2x2x1
jax: 0.10.0
libtpu: 0.0.40
codegen_flags: <defaults>
</compile_context>

<pallas_src>
import jax
import jax.numpy as jnp
from jax.experimental import pallas as pl
from jax.experimental.pallas import tpu as pltpu

_MIB = 1024 * 1024


def _sublane_multiple(dtype) -> int:
    # Native packed sublane tiling: f32 -> 8, bf16/fp16 -> 16, int8/fp8 -> 32.
    return max(8, 32 // max(1, jnp.dtype(dtype).itemsize))


def _vmem_budget():
    """Per-generation (v5e/v6e/v7x) working-set cap and scoped-VMEM limit."""
    try:
        vmem_cap = int(pltpu.get_tpu_info().vmem_capacity_bytes)
    except Exception:
        vmem_cap = 64 * _MIB  # conservative fallback (v7x-sized VMEM)
    # Per-step working set = double-buffered inputs + block-sized f32
    # temporaries + (tiny) output buffers. Cap at 48 MiB and never more than
    # 3/4 of physical VMEM (v7x: 48 of 64 MiB; v5e/v6e: 48 of 128 MiB).
    ws_cap = min(48 * _MIB, (vmem_cap * 3) // 4)
    # Scoped-VMEM limit with headroom for Mosaic internals.
    vmem_limit = int(min((vmem_cap * 7) // 8, ws_cap + 16 * _MIB))
    return ws_cap, vmem_limit


# --------------------------------------------------------------------------
# Path 1: whole class axis per tile (the common case).
# --------------------------------------------------------------------------
def _make_kl_rowblock_kernel(batch_size, block_batch, include_target_entropy):
    ragged = (batch_size % block_batch) != 0

    def kernel(logits_ref, target_ref, out_ref):
        x = logits_ref[...].astype(jnp.float32)   # (block_batch, C)
        t = target_ref[...].astype(jnp.float32)   # (block_batch, C)

        if ragged:
            # Mask only the target: t == 0 forces the pointwise term to 0, and
            # any NaN/Inf from garbage logits stays in rows whose output block
            # entries Pallas discards on the partial last tile anyway.
            row = (pl.program_id(0) * block_batch
                   + jax.lax.broadcasted_iota(jnp.int32, t.shape, 0))
            t = jnp.where(row < batch_size, t, 0.0)

        # Numerically stable log_softmax along the class (lane) axis.
        m = jnp.max(x, axis=-1, keepdims=True)
        s = x - m
        lse = jnp.log(jnp.sum(jnp.exp(s), axis=-1, keepdims=True))
        log_probs = s - lse

        if include_target_entropy:
            safe_t = jnp.where(t > 0, t, 1.0)
            elem = jnp.where(t > 0, t * (jnp.log(safe_t) - log_probs), 0.0)
        else:
            # Drop the constant-in-logits t*log(t) term (halves EUP work).
            elem = -t * log_probs

        # Per-row KL partial sums; final reduction + /B is JAX glue.
        out_ref[...] = jnp.sum(elem, axis=-1, keepdims=True)

    return kernel


# --------------------------------------------------------------------------
# Path 2: vocab-sized num_classes — stream class chunks, online logsumexp.
#   KL_row = sum_c t*(log t - (x - lse))
#          = [sum_c t*log t - sum_c t*x] + lse * [sum_c t]
# --------------------------------------------------------------------------
def _make_kl_chunked_kernel(batch_size, num_classes, block_batch, block_classes,
                            include_target_entropy):
    ragged_rows = (batch_size % block_batch) != 0
    ragged_cols = (num_classes % block_classes) != 0

    def kernel(logits_ref, target_ref, out_ref, m_sc, l_sc, kl_sc, t_sc):
        ci = pl.program_id(1)

        @pl.when(ci == 0)
        def _():
            m_sc[...] = jnp.full_like(m_sc, -jnp.inf)
            l_sc[...] = jnp.zeros_like(l_sc)
            kl_sc[...] = jnp.zeros_like(kl_sc)
            t_sc[...] = jnp.zeros_like(t_sc)

        x = logits_ref[...].astype(jnp.float32)   # (block_batch, block_classes)
        t = target_ref[...].astype(jnp.float32)

        if ragged_cols:
            col = (ci * block_classes
                   + jax.lax.broadcasted_iota(jnp.int32, x.shape, 1))
            col_ok = col < num_classes
            t = jnp.where(col_ok, t, 0.0)
            x_lse = jnp.where(col_ok, x, -jnp.inf)   # excluded from max / lse
            x = jnp.where(col_ok, x, 0.0)            # cross-term sees finite 0
        else:
            x_lse = x

        if ragged_rows:
            row = (pl.program_id(0) * block_batch
                   + jax.lax.broadcasted_iota(jnp.int32, t.shape, 0))
            t = jnp.where(row < batch_size, t, 0.0)

        # Online logsumexp across class chunks.
        m_new = jnp.maximum(m_sc[...], jnp.max(x_lse, axis=-1, keepdims=True))
        alpha = jnp.exp(m_sc[...] - m_new)
        l_sc[...] = alpha * l_sc[...] + jnp.sum(jnp.exp(x_lse - m_new),
                                                axis=-1, keepdims=True)
        m_sc[...] = m_new

        cross = jnp.sum(t * x, axis=-1, keepdims=True)
        if include_target_entropy:
            ent = jnp.sum(
                jnp.where(t > 0, t * jnp.log(jnp.where(t > 0, t, 1.0)), 0.0),
                axis=-1, keepdims=True)
            kl_sc[...] += ent - cross
        else:
            kl_sc[...] += -cross
        t_sc[...] += jnp.sum(t, axis=-1, keepdims=True)

        @pl.when(ci == pl.num_programs(1) - 1)
        def _():
            lse = m_sc[...] + jnp.log(l_sc[...])
            out_ref[...] = kl_sc[...] + lse * t_sc[...]

    return kernel


def kl_div_with_softmax(input_logits, target_distributions, *,
                        reduction="batchmean",
                        block_batch=None, block_classes=None,
                        include_target_entropy=True):
    """KL(target || softmax(input_logits)).

    This kernel is HBM-bandwidth bound: passing bf16/fp16 logits and targets
    halves HBM traffic (math is done in f32 inside the kernel either way).
    ``include_target_entropy=False`` drops the constant-in-logits sum(t*log t)
    term (gradients unaffected; forward value shifts by that constant).
    """
    B, C = input_logits.shape
    assert target_distributions.shape == (B, C)

    ix = jnp.dtype(input_logits.dtype).itemsize
    it = jnp.dtype(target_distributions.dtype).itemsize
    row_mult = max(_sublane_multiple(input_logits.dtype),
                   _sublane_multiple(target_distributions.dtype))
    b_pad = pl.cdiv(B, row_mult) * row_mult

    ws_cap, vmem_limit = _vmem_budget()
    # Working-set bytes per (row, class) element of a tile:
    #   2x double-buffered inputs + ~6 block-sized f32 temporaries in the body
    #   (upcasts, shifted logits, exp, log_probs, elem, masks).
    bytes_per_elem = 2 * (ix + it) + 6 * 4
    rows_full_c = ws_cap // (C * bytes_per_elem)

    use_chunked = ((block_classes is not None and block_classes < C) or
                   (block_classes is None and rows_full_c < row_mult))

    n_transcend_per_elem = 2 if include_target_entropy else 1
    cost = pl.CostEstimate(
        flops=8 * B * C,
        transcendentals=n_transcend_per_elem * B * C + 2 * B,
        bytes_accessed=B * C * (ix + it) + B * 4,
    )

    if not use_chunked:
        if block_batch is None:
            block_batch = int(rows_full_c)
        block_batch = max(row_mult, (int(block_batch) // row_mult) * row_mult)
        # Keep >= 2 row blocks whenever B allows it so the "parallel" grid axis
        # can shard across v7x's two TensorCores (harmless on v5e/v6e).
        half = pl.cdiv(pl.cdiv(B, 2), row_mult) * row_mult
        block_batch = min(block_batch, max(row_mult, half), b_pad)
        grid = (pl.cdiv(B, block_batch),)

        per_row = pl.pallas_call(
            _make_kl_rowblock_kernel(B, block_batch, include_target_entropy),
            out_shape=jax.ShapeDtypeStruct((B, 1), jnp.float32),
            grid_spec=pltpu.PrefetchScalarGridSpec(
                num_scalar_prefetch=0,
                grid=grid,
                in_specs=[
                    pl.BlockSpec((block_batch, C), lambda i: (i, 0)),
                    pl.BlockSpec((block_batch, C), lambda i: (i, 0)),
                ],
                out_specs=pl.BlockSpec((block_batch, 1), lambda i: (i, 0)),
            ),
            compiler_params=pltpu.CompilerParams(
                dimension_semantics=("parallel",),
                vmem_limit_bytes=vmem_limit,
            ),
            cost_estimate=cost,
        )(input_logits, target_distributions)
    else:
        # Vocab-sized C: stream class chunks with an online logsumexp and
        # per-row VMEM scratch accumulators (class axis last, "arbitrary").
        if block_batch is None:
            block_batch = 8 * row_mult
        block_batch = max(row_mult, (int(block_batch) // row_mult) * row_mult)
        block_batch = min(block_batch, b_pad)
        if block_classes is None:
            block_classes = ws_cap // (block_batch * bytes_per_elem)
        block_classes = max(128, (int(block_classes) // 128) * 128)
        block_classes = min(block_classes, pl.cdiv(C, 128) * 128)
        grid = (pl.cdiv(B, block_batch), pl.cdiv(C, block_classes))

        per_row = pl.pallas_call(
            _make_kl_chunked_kernel(B, C, block_batch, block_classes,
                                    include_target_entropy),
            out_shape=jax.ShapeDtypeStruct((B, 1), jnp.float32),
            grid_spec=pltpu.PrefetchScalarGridSpec(
                num_scalar_prefetch=0,
                grid=grid,
                in_specs=[
                    pl.BlockSpec((block_batch, block_classes),
                                 lambda i, j: (i, j)),
                    pl.BlockSpec((block_batch, block_classes),
                                 lambda i, j: (i, j)),
                ],
                out_specs=pl.BlockSpec((block_batch, 1), lambda i, j: (i, 0)),
                scratch_shapes=[pltpu.VMEM((block_batch, 1), jnp.float32)] * 4,
            ),
            compiler_params=pltpu.CompilerParams(
                dimension_semantics=("parallel", "arbitrary"),
                vmem_limit_bytes=vmem_limit,
            ),
            cost_estimate=cost,
        )(input_logits, target_distributions)

    total = jnp.sum(per_row)
    if reduction == "batchmean":
        return (total / B).astype(jnp.float32)
    if reduction == "sum":
        return total.astype(jnp.float32)
    if reduction == "mean":
        return (total / (B * C)).astype(jnp.float32)
    # TODO(synk): reduction='none' needs an elementwise (B, C) output kernel.
    raise NotImplementedError(f"reduction={reduction!r} is not supported")


if __name__ == "__main__":
    key = jax.random.PRNGKey(0)
    k1, k2, k3, k4 = jax.random.split(key, 4)

    def ref_loss(x, t):
        lp = jax.nn.log_softmax(x.astype(jnp.float32), axis=1)
        tf = t.astype(jnp.float32)
        e = jnp.where(tf > 0,
                      tf * (jnp.log(jnp.where(tf > 0, tf, 1.0)) - lp), 0.0)
        return jnp.sum(e) / x.shape[0]

    # --- test 1: common path, small (8,128)-aligned f32 shapes -------------
    B, C = 16, 128
    input_logits = jax.random.normal(k1, (B, C), dtype=jnp.float32)
    target_distributions = jax.nn.softmax(
        jax.random.normal(k2, (B, C), dtype=jnp.float32), axis=1)

    loss = jax.block_until_ready(
        kl_div_with_softmax(input_logits, target_distributions))
    ref = ref_loss(input_logits, target_distributions)
    assert jnp.allclose(loss, ref, rtol=1e-5, atol=1e-6), (loss, ref)

    # --- test 2: class-chunked (vocab-style) path, bf16 inputs, ragged -----
    B2, C2 = 10, 400
    logits2 = jax.random.normal(k3, (B2, C2), dtype=jnp.bfloat16)
    target2 = jax.nn.softmax(
        jax.random.normal(k4, (B2, C2), dtype=jnp.float32), axis=1
    ).astype(jnp.bfloat16)
    loss2 = jax.block_until_ready(
        kl_div_with_softmax(logits2, target2, block_batch=16, block_classes=128))
    ref2 = ref_loss(logits2, target2)
    assert jnp.allclose(loss2, ref2, rtol=1e-3, atol=1e-4), (loss2, ref2)

    print("KERNEL_OK")
</pallas_src>

<mosaic_0001>
module attributes {stable_mosaic.version = 11 : i64} {
  func.func @kernel(%arg0: i32, %arg1: memref<8x128xf32, #tpu.memory_space<vmem>>, %arg2: memref<8x128xf32, #tpu.memory_space<vmem>>, %arg3: memref<8x1xf32, #tpu.memory_space<vmem>>) attributes {dimension_semantics = [#tpu.dimension_semantics<parallel>], iteration_bounds = array<i64: 2>, scalar_prefetch = 0 : i64, scratch_operands = 0 : i64, tpu.core_type = #tpu.core_type<tc>, window_params = [{transform_indices = @transform_0, window_bounds = array<i64: 8, 128>}, {transform_indices = @transform_1, window_bounds = array<i64: 8, 128>}, {transform_indices = @transform_2, window_bounds = array<i64: 8, 1>}]} {
    %c0 = arith.constant 0 : index
    %c0_0 = arith.constant 0 : index
    %0 = vector.load %arg1[%c0, %c0_0] : memref<8x128xf32, #tpu.memory_space<vmem>>, vector<8x128xf32>
    %c0_1 = arith.constant 0 : index
    %c0_2 = arith.constant 0 : index
    %1 = vector.load %arg2[%c0_1, %c0_2] : memref<8x128xf32, #tpu.memory_space<vmem>>, vector<8x128xf32>
    %cst = arith.constant dense<0xFF800000> : vector<8xf32>
    %2 = vector.multi_reduction <maximumf>, %0, %cst [1] : vector<8x128xf32> to vector<8xf32>
    %3 = vector.shape_cast %2 : vector<8xf32> to vector<8x1xf32>
    %4 = vector.broadcast %3 : vector<8x1xf32> to vector<8x128xf32>
    %5 = arith.subf %0, %4 : vector<8x128xf32>
    %6 = math.exp %5 : vector<8x128xf32>
    %cst_3 = arith.constant dense<0.000000e+00> : vector<8xf32>
    %7 = vector.multi_reduction <add>, %6, %cst_3 [1] : vector<8x128xf32> to vector<8xf32>
    %8 = vector.shape_cast %7 : vector<8xf32> to vector<8x1xf32>
    %9 = math.log %8 : vector<8x1xf32>
    %10 = vector.broadcast %9 : vector<8x1xf32> to vector<8x128xf32>
    %11 = arith.subf %5, %10 : vector<8x128xf32>
    %cst_4 = arith.constant 0.000000e+00 : f32
    %12 = vector.broadcast %cst_4 : f32 to vector<8x128xf32>
    %13 = arith.cmpf ogt, %1, %12 : vector<8x128xf32>
    %cst_5 = arith.constant 1.000000e+00 : f32
    %14 = vector.broadcast %cst_5 : f32 to vector<8x128xf32>
    %15 = arith.select %13, %1, %14 : vector<8x128xi1>, vector<8x128xf32>
    %cst_6 = arith.constant 0.000000e+00 : f32
    %16 = vector.broadcast %cst_6 : f32 to vector<8x128xf32>
    %17 = arith.cmpf ogt, %1, %16 : vector<8x128xf32>
    %18 = math.log %15 : vector<8x128xf32>
    %19 = arith.subf %18, %11 : vector<8x128xf32>
    %20 = arith.mulf %1, %19 : vector<8x128xf32>
    %cst_7 = arith.constant 0.000000e+00 : f32
    %21 = vector.broadcast %cst_7 : f32 to vector<8x128xf32>
    %22 = arith.select %17, %20, %21 : vector<8x128xi1>, vector<8x128xf32>
    %cst_8 = arith.constant dense<0.000000e+00> : vector<8xf32>
    %23 = vector.multi_reduction <add>, %22, %cst_8 [1] : vector<8x128xf32> to vector<8xf32>
    %24 = vector.shape_cast %23 : vector<8xf32> to vector<8x1xf32>
    %c0_9 = arith.constant 0 : index
    %c0_10 = arith.constant 0 : index
    %25 = vector.load %arg3[%c0_9, %c0_10] : memref<8x1xf32, #tpu.memory_space<vmem>>, vector<8x1xf32>
    tpu.vector_store %arg3[%c0_9, %c0_10], %24 {strides = array<i32>} : memref<8x1xf32, #tpu.memory_space<vmem>>, vector<8x1xf32>,
    return
  }
  func.func @transform_0(%arg0: i32) -> (i32, i32) {
    %c0_i32 = arith.constant 0 : i32
    %c0_i32_0 = arith.constant 0 : i32
    return %arg0, %c0_i32 : i32, i32
  }
  func.func @transform_1(%arg0: i32) -> (i32, i32) {
    %c0_i32 = arith.constant 0 : i32
    %c0_i32_0 = arith.constant 0 : i32
    return %arg0, %c0_i32 : i32, i32
  }
  func.func @transform_2(%arg0: i32) -> (i32, i32) {
    %c0_i32 = arith.constant 0 : i32
    %c0_i32_0 = arith.constant 0 : i32
    return %arg0, %c0_i32 : i32, i32
  }
}

</mosaic_0001>

<llo_original>
// kernel: tpu_custom_call.1
$region0: #{tpu_custom_call.1}
  #allocation0 [shape = 'u32[]', space=smem, size = 0x4, offset = 0x4, fixed_abs, tag = 'smem constant byte address 0x4 - core index']
  #allocation1 [shape = 'u32[144,128]{1,0:T(1,128)}', space=vmem, size = 0x12000, scoped, tag = 'internal scratch']
  %s0 = inlined_call_operand.hbm [shape: f32[16,128], index: 0, kind: input, shape index: {}]
  %s1 = inlined_call_operand.hbm [shape: f32[16,128], index: 1, kind: input, shape index: {}]
  %s2 = inlined_call_operand.vmem [shape: f32[16,1], index: 2, kind: output, shape index: {}]
  %s3 = sld [smem:[#allocation0]]
  $region49: #{tpu_custom_call.1} parent=0
    _
  %s5 = ssub.s32 1, %s3
  %s6 = scalar_select 0, %s5, %s3
  $region1: #{tpu_custom_call.1} parent=0
    #allocation2 [shape = 'u8[8192]{0}', space=vmem, size = 0x2000, scoped, tag = 'input window, operand 0']
    #allocation3 [shape = 's32[2]{0}', space=sflag, size = 0x8, scoped, tag = 'scoped memory for tpu_custom_call.1']
    #allocation4 [shape = 'u8[8192]{0}', space=vmem, size = 0x2000, scoped, tag = 'input window, operand 1']
    #allocation5 [shape = 's32[2]{0}', space=sflag, size = 0x8, scoped, tag = 'scoped memory for tpu_custom_call.1']
    %7 = vsyncpa [#allocation3], 0
    %s8 = scalar_lea.sflag [#allocation3], 1
    %9 = vsyncpa %s8, 0
    %10 = vsyncpa [#allocation5], 0
    %s11 = scalar_lea.sflag [#allocation5], 1
    %12 = vsyncpa %s11, 0
    loop: start=0, step=1, limit=4
    $region2: #{tpu_custom_call.1} parent=1 // loop_pre_header
      _
    $region3: #{tpu_custom_call.1} parent=1 // loop_header
      %s14 = sphi 0, %s18
      %p15 = scmp.ge.s32.totalorder %s14, 4
      %s24 = sphi 0, %s26
      %s27 = sphi 0, %s24
      %s28 = sphi 0, %s27
      %s44 = sphi 0, %s28
      %s50 = sphi 0, %s52
      %s53 = sphi 0, %s50
      %s54 = sphi 0, %s53
      %s70 = sphi 0, %s54
      %s76 = sphi 0, %s78
      %s79 = sphi 0, %s76
      %s80 = sphi 0, %s79
      %s96 = sphi 0, %s80
    $region4: #{tpu_custom_call.1} parent=1 // loop_header_branch
      %17 = sbr.rel (%p15) target = $region8
    $region5: #{tpu_custom_call.1} parent=1 // loop_body
      %s19 = ssub.s32 %s14, 1
      %s20 = ssub.s32 %s14, 2
      %s21 = sadd.s32 %s14, 1
      %s22 = ssub.s32 %s14, %s21
      %p23 = scmp.eq.s32.totalorder %s22, 0
      %s25 = sadd.s32 %s24, 1
      %s26 = scalar_select %p23, %s24, %s25
      %p29 = pneg %p23
      %p30 = scmp.eq.s32.totalorder %s14, 1
      %p31 = por %p29, %p30
      %p32 = scmp.ne.s32.totalorder %s24, %s27
      %p33 = scmp.eq.s32.totalorder %s14, 0
      %p34 = por %p32, %p33
      %p35 = scmp.ne.s32.totalorder %s24, %s27
      %p36 = scmp.eq.s32.totalorder %s19, 1
      %p37 = por %p35, %p36
      %p38 = scmp.ne.s32.totalorder %s27, %s28
      %p39 = scmp.eq.s32.totalorder %s19, 0
      %p40 = por %p38, %p39
      %p41 = scmp.ne.s32.totalorder %s27, %s28
      %p42 = scmp.eq.s32.totalorder %s20, 1
      %p43 = por %p41, %p42
      %p45 = scmp.ne.s32.totalorder %s28, %s44
      %p46 = scmp.eq.s32.totalorder %s20, 0
      %p47 = por %p45, %p46
      %s48 = ssub.s32 %s14, %s21
      %p49 = scmp.eq.s32.totalorder %s48, 0
      %s51 = sadd.s32 %s50, 1
      %s52 = scalar_select %p49, %s50, %s51
      %p55 = pneg %p49
      %p56 = scmp.eq.s32.totalorder %s14, 1
      %p57 = por %p55, %p56
      %p58 = scmp.ne.s32.totalorder %s50, %s53
      %p59 = scmp.eq.s32.totalorder %s14, 0
      %p60 = por %p58, %p59
      %p61 = scmp.ne.s32.totalorder %s50, %s53
      %p62 = scmp.eq.s32.totalorder %s19, 1
      %p63 = por %p61, %p62
      %p64 = scmp.ne.s32.totalorder %s53, %s54
      %p65 = scmp.eq.s32.totalorder %s19, 0
      %p66 = por %p64, %p65
      %p67 = scmp.ne.s32.totalorder %s53, %s54
      %p68 = scmp.eq.s32.totalorder %s20, 1
      %p69 = por %p67, %p68
      %p71 = scmp.ne.s32.totalorder %s54, %s70
      %p72 = scmp.eq.s32.totalorder %s20, 0
      %p73 = por %p71, %p72
      %s74 = ssub.s32 %s14, %s21
      %p75 = scmp.eq.s32.totalorder %s74, 0
      %s77 = sadd.s32 %s76, 1
      %s78 = scalar_select %p75, %s76, %s77
      %p81 = pneg %p75
      %p82 = scmp.eq.s32.totalorder %s14, 1
      %p83 = por %p81, %p82
      %p84 = scmp.ne.s32.totalorder %s76, %s79
      %p85 = scmp.eq.s32.totalorder %s14, 0
      %p86 = por %p84, %p85
      %p87 = scmp.ne.s32.totalorder %s76, %s79
      %p88 = scmp.eq.s32.totalorder %s19, 1
      %p89 = por %p87, %p88
      %p90 = scmp.ne.s32.totalorder %s79, %s80
      %p91 = scmp.eq.s32.totalorder %s19, 0
      %p92 = por %p90, %p91
      %p93 = scmp.ne.s32.totalorder %s79, %s80
      %p94 = scmp.eq.s32.totalorder %s20, 1
      %p95 = por %p93, %p94
      %p97 = scmp.ne.s32.totalorder %s80, %s96
      %p98 = scmp.eq.s32.totalorder %s20, 0
      %p99 = por %p97, %p98
      %p100 = scmp.le.s32.totalorder 1, %s14
      %p101 = scmp.lt.s32.totalorder %s14, 3
      %p102 = pnand %p100, %p101
      %p103 = pneg %p102
      // Predicated region
      $region9: #{tpu_custom_call.1} parent=5 // pred_check
        _
      $region10: #{tpu_custom_call.1} parent=5 // pred_check_branch
        %105 = sbr.rel (%p102) target = $region12
      $region11: #{tpu_custom_call.1} parent=5 // pred_region
        %s106 = ssub.s32 %s14, 1
      $region12: #{tpu_custom_call.1} parent=5 // pred_fallthru
        _
      %p107 = scmp.lt.s32.totalorder %s14, 2
      // Predicated region
      $region13: #{tpu_custom_call.1} parent=5 // pred_check
        %p108 = pneg %p107
      $region14: #{tpu_custom_call.1} parent=5 // pred_check_branch
        %110 = sbr.rel (%p108) target = $region16
      $region15: #{tpu_custom_call.1} parent=5 // pred_region
        // Predicated region
        $region17: #{tpu_custom_call.1} parent=15 // pred_check
          %p111 = pneg %p34
        $region18: #{tpu_custom_call.1} parent=15 // pred_check_branch
          %113 = sbr.rel (%p111) target = $region20
        $region19: #{tpu_custom_call.1} parent=15 // pred_region
          %s114 = sand.u32 %s24, 1
          %s115 = scalar_lea.sflag [#allocation3], %s114
          %s116 = sand.u32 %s24, 1
          %s117 = smul.addr %s116, 8
          %s118 = scalar_lea.vmem [#allocation2], %s117
          %s120 = ssub.s32 128, 128
          %121 = vsyncadd %s115, %s120
          %s122 = smul.addr %s14, 128
          %s123 = scalar_lea.hbm %s0, %s122
          %s125 = sshll.u32 %s118, 4
          %s126 = int_to_ptr.vmem [resolvable:$true] %s125
          %128 = dma.hbm_to_vmem [thread:$0]  %s123, 128, %s126, %s115
        $region20: #{tpu_custom_call.1} parent=15 // pred_fallthru
          _
        // Predicated region
        $region21: #{tpu_custom_call.1} parent=15 // pred_check
          %p129 = pneg %p60
        $region22: #{tpu_custom_call.1} parent=15 // pred_check_branch
          %131 = sbr.rel (%p129) target = $region24
        $region23: #{tpu_custom_call.1} parent=15 // pred_region
          %s132 = sand.u32 %s50, 1
          %s133 = scalar_lea.sflag [#allocation5], %s132
          %s134 = sand.u32 %s50, 1
          %s135 = smul.addr %s134, 8
          %s136 = scalar_lea.vmem [#allocation4], %s135
          %s138 = ssub.s32 128, 128
          %139 = vsyncadd %s133, %s138
          %s140 = smul.addr %s14, 128
          %s141 = scalar_lea.hbm %s1, %s140
          %s143 = sshll.u32 %s136, 4
          %s144 = int_to_ptr.vmem [resolvable:$true] %s143
          %146 = dma.hbm_to_vmem [thread:$0]  %s141, 128, %s144, %s133
        $region24: #{tpu_custom_call.1} parent=15 // pred_fallthru
          _
      $region16: #{tpu_custom_call.1} parent=5 // pred_fallthru
        _
      %p147 = scmp.le.s32.totalorder 1, %s14
      %p148 = scmp.lt.s32.totalorder %s14, 3
      %p149 = pnand %p147, %p148
      %p150 = pneg %p149
      // Predicated region
      $region25: #{tpu_custom_call.1} parent=5 // pred_check
        _
      $region26: #{tpu_custom_call.1} parent=5 // pred_check_branch
        %152 = sbr.rel (%p149) target = $region28
      $region27: #{tpu_custom_call.1} parent=5 // pred_region
        %s153 = ssub.s32 %s14, 1
        %s154 = sand.u32 %s27, 1
        %s155 = scalar_lea.sflag [#allocation3], %s154
        %s156 = sand.u32 %s27, 1
        %s157 = smul.addr %s156, 8
        %s158 = scalar_lea.vmem [#allocation2], %s157
        // Predicated region
        $region29: #{tpu_custom_call.1} parent=27 // pred_check
          %p159 = pneg %p40
        $region30: #{tpu_custom_call.1} parent=27 // pred_check_branch
          %161 = sbr.rel (%p159) target = $region32
        $region31: #{tpu_custom_call.1} parent=27 // pred_region
          %162 = dma.done %s155, 128
        $region32: #{tpu_custom_call.1} parent=27 // pred_fallthru
          _
        %s163 = sand.u32 %s53, 1
        %s164 = scalar_lea.sflag [#allocation5], %s163
        %s165 = sand.u32 %s53, 1
        %s166 = smul.addr %s165, 8
        %s167 = scalar_lea.vmem [#allocation4], %s166
        // Predicated region
        $region33: #{tpu_custom_call.1} parent=27 // pred_check
          %p168 = pneg %p66
        $region34: #{tpu_custom_call.1} parent=27 // pred_check_branch
          %170 = sbr.rel (%p168) target = $region36
        $region35: #{tpu_custom_call.1} parent=27 // pred_region
          %171 = dma.done %s164, 128
        $region36: #{tpu_custom_call.1} parent=27 // pred_fallthru
          _
        %s172 = sand.u32 %s27, 1
        %s173 = scalar_lea.sflag [#allocation3], %s172
        %s174 = sand.u32 %s27, 1
        %s175 = smul.addr %s174, 8
        %s176 = scalar_lea.vmem [#allocation2], %s175
        %p177 = pneg %p40
        %p178 = pneg %p37
        %s179 = sand.u32 %s53, 1
        %s180 = scalar_lea.sflag [#allocation5], %s179
        %s181 = sand.u32 %s53, 1
        %s182 = smul.addr %s181, 8
        %s183 = scalar_lea.vmem [#allocation4], %s182
        %p184 = pneg %p66
        %p185 = pneg %p63
        %p186 = pneg %p92
        %p187 = pneg %p89
        %p188 = scmp.lt.s32.totalorder %s19, 1
        %s189 = scalar_select %p188, %s19, 1
        %s190 = smul.addr %s189, 8
        %s191 = scalar_lea.vmem %s2, %s190
        %p192 = scmp.lt.s32.totalorder %s19, 1
        %s193 = scalar_select %p192, %s19, 1
        %s194 = smul.addr %s193, 8
        %s195 = scalar_lea.vmem %s2, %s194
        %v196 = vld [vmem:[%s158] sm:$0xff]
        %v197 = vld [vmem:[%s167] sm:$0xff]
        %198 = vmax.xlane.f32.xlu0 %v196
        %v199 = vpop.xlane.xlu0 %198
        %v200 = vsub.f32 %v196, %v199
        %v201 = vmul.f32 %v200, 1.442695
        %v202 = vpow.pop %v201
        %203 = vadd.xlane.f32.xlu0 %v202
        %v204 = vpop.xlane.xlu0 %203
        %v205 = vlog2.pop %v204
        %v206 = vmul.f32 %v205, 0.6931472
        %v207 = vsub.f32 %v200, %v206
        %vm208 = vcmp.gt.f32.partialorder %v197, 0.0
        %v209 = vsel %vm208, %v197, 1.0
        %v210 = vlog2.pop %v209
        %v211 = vmul.f32 %v210, 0.6931472
        %v212 = vsub.f32 %v211, %v207
        %v213 = vmul.f32 %v197, %v212
        %v214 = vsel %vm208, %v213, 0.0
        %215 = vadd.xlane.f32.xlu0 %v214
        %v216 = vpop.xlane.xlu0 %215
        %vm217 = vcmask 7168
        %218 = vst.msk [vmem:[%s195] sm:$0xff] %vm217, %v216
        %p219 = scmp.lt.s32.totalorder %s19, 1
        %s220 = scalar_select %p219, %s19, 1
        %s221 = smul.addr %s220, 8
        %s222 = scalar_lea.vmem %s2, %s221
        // Predicated region
        $region37: #{tpu_custom_call.1} parent=27 // pred_check
          %p223 = pneg %p89
        $region38: #{tpu_custom_call.1} parent=27 // pred_check_branch
          %225 = sbr.rel (%p223) target = $region40
        $region39: #{tpu_custom_call.1} parent=27 // pred_region
          _
        $region40: #{tpu_custom_call.1} parent=27 // pred_fallthru
          _
      $region28: #{tpu_custom_call.1} parent=5 // pred_fallthru
        _
      %p226 = scmp.le.s32.totalorder 2, %s14
      // Predicated region
      $region41: #{tpu_custom_call.1} parent=5 // pred_check
        %p227 = pneg %p226
      $region42: #{tpu_custom_call.1} parent=5 // pred_check_branch
        %229 = sbr.rel (%p227) target = $region44
      $region43: #{tpu_custom_call.1} parent=5 // pred_region
        %s230 = ssub.s32 %s14, 2
        // Predicated region
        $region45: #{tpu_custom_call.1} parent=43 // pred_check
          %p231 = pneg %p95
        $region46: #{tpu_custom_call.1} parent=43 // pred_check_branch
          %233 = sbr.rel (%p231) target = $region48
        $region47: #{tpu_custom_call.1} parent=43 // pred_region
          %p234 = scmp.lt.s32.totalorder %s20, 1
          %s235 = scalar_select %p234, %s20, 1
          %s236 = smul.addr %s235, 8
          %s237 = scalar_lea.vmem %s2, %s236
        $region48: #{tpu_custom_call.1} parent=43 // pred_fallthru
          _
      $region44: #{tpu_custom_call.1} parent=5 // pred_fallthru
        _
    $region6: #{tpu_custom_call.1} parent=1 // loop_footer
      %s18 = sadd.s32 1, %s14
    $region7: #{tpu_custom_call.1} parent=1 // loop_footer_branch
      %13 = sbr.rel target = $region3
    $region8: #{tpu_custom_call.1} parent=1 // loop_exit
      _
    %238 = vsyncpa [#allocation3], 1
    %s239 = scalar_lea.sflag [#allocation3], 1
    %240 = vsyncpa %s239, 1
    %241 = vsyncpa [#allocation5], 1
    %s242 = scalar_lea.sflag [#allocation5], 1
    %243 = vsyncpa %s242, 1

</llo_original>
